<compile_context>
chip_gen: v5e
topology: v5e:2x2
jax: 0.10.0
libtpu: 0.0.40
codegen_flags: <defaults>
</compile_context>

<pallas_src>
import functools
import math

import jax
import jax.numpy as jnp
from jax import lax
from jax.experimental import pallas as pl
from jax.experimental.pallas import tpu as pltpu


# ----------------------------------------------------------------------------
# Padding / tiling helpers (must stay consistent between caller and kernel)
# ----------------------------------------------------------------------------
def _round_up(x, m):
    return -(-x // m) * m


def _pad_dims(cout, k, p):
    """Padded (Cout, K, P) dims consistent with _tile_sizes."""
    c_pad = _round_up(cout, 8)
    if c_pad > 512:
        c_pad = _round_up(c_pad, 256)
    k_pad = _round_up(k, 8)
    if k_pad > 2304 and k_pad % 1152 != 0:
        k_pad = _round_up(k_pad, 1024)
    p_pad = _round_up(p, 128)
    if p_pad > 512:
        p_pad = _round_up(p_pad, 512)
    return c_pad, k_pad, p_pad


def _tile_sizes(c_pad, k_pad, p_pad):
    tco = c_pad if c_pad <= 512 else 256
    tp = p_pad if p_pad <= 512 else 512
    if k_pad <= 2304:
        tk = k_pad
    elif k_pad % 1152 == 0:
        tk = 1152
    else:
        tk = 1024
    return tco, tk, tp


# ----------------------------------------------------------------------------
# Pallas kernel: tiled  relu( W @ X + bias )  with f32 VMEM accumulator
# ----------------------------------------------------------------------------
def _mm_bias_kernel(w_ref, x_ref, b_ref, o_ref, acc_ref, *, relu):
    @pl.when(pl.program_id(2) == 0)
    def _init():
        acc_ref[...] = jnp.zeros_like(acc_ref)

    acc_ref[...] += jnp.dot(w_ref[...], x_ref[...],
                            preferred_element_type=jnp.float32)

    @pl.when(pl.program_id(2) == pl.num_programs(2) - 1)
    def _finalize():
        r = acc_ref[...] + b_ref[...]
        if relu:
            r = jnp.maximum(r, 0.0)
        o_ref[...] = r


def _pallas_matmul_bias(wmat, xmat, bias, relu=True):
    """wmat: (C_pad, K_pad) bf16, xmat: (K_pad, P_pad) bf16, bias: (C_pad, 1) f32
       -> (C_pad, P_pad) f32 = relu(wmat @ xmat + bias)."""
    c_pad, k_pad = wmat.shape
    k_pad2, p_pad = xmat.shape
    assert k_pad == k_pad2
    tco, tk, tp = _tile_sizes(c_pad, k_pad, p_pad)
    assert c_pad % tco == 0 and k_pad % tk == 0 and p_pad % tp == 0
    grid = (c_pad // tco, p_pad // tp, k_pad // tk)
    kernel = functools.partial(_mm_bias_kernel, relu=relu)
    return pl.pallas_call(
        kernel,
        out_shape=jax.ShapeDtypeStruct((c_pad, p_pad), jnp.float32),
        grid_spec=pltpu.PrefetchScalarGridSpec(
            num_scalar_prefetch=0,
            grid=grid,
            in_specs=[
                pl.BlockSpec((tco, tk), lambda co, sp, kk: (co, kk)),
                pl.BlockSpec((tk, tp), lambda co, sp, kk: (kk, sp)),
                pl.BlockSpec((tco, 1), lambda co, sp, kk: (co, 0)),
            ],
            out_specs=pl.BlockSpec((tco, tp), lambda co, sp, kk: (co, sp)),
            scratch_shapes=[pltpu.VMEM((tco, tp), jnp.float32)],
        ),
        compiler_params=pltpu.CompilerParams(
            dimension_semantics=("parallel", "parallel", "arbitrary"),
            vmem_limit_bytes=48 * 1024 * 1024,
        ),
    )(wmat, xmat, bias)


# ----------------------------------------------------------------------------
# REBNCONV: Conv2d(3x3, dilation) + folded eval-mode BN + ReLU, via the kernel
# ----------------------------------------------------------------------------
@functools.partial(jax.jit, static_argnames=("dirate",))
def rebnconv(p, x, *, dirate=1):
    """x: (N, Cin, H, W) f32 -> (N, Cout, H, W) f32."""
    w, b = p["w"], p["b"]
    n, cin, h, wdt = x.shape
    cout, _, kh, kw = w.shape
    d = dirate
    ph, pw = d * (kh // 2), d * (kw // 2)
    xp = jnp.pad(x, ((0, 0), (0, 0), (ph, ph), (pw, pw)))

    # channel-major im2col: X(K, P) with K = Cin*kh*kw, P = N*H*W.
    cols = []
    for ki in range(kh):
        for kj in range(kw):
            cols.append(xp[:, :, ki * d:ki * d + h, kj * d:kj * d + wdt])
    pat = jnp.stack(cols, axis=2)                       # (N, Cin, kh*kw, H, W)
    k = cin * kh * kw
    pnum = n * h * wdt
    if n == 1:
        pat = pat.reshape(k, pnum)
    else:
        pat = pat.transpose(1, 2, 0, 3, 4).reshape(k, pnum)

    # fold eval-mode BatchNorm: scale into the weight rows, shift into the bias
    eps = 1e-5
    scale = p["gamma"] / jnp.sqrt(p["var"] + eps)                  # (Cout,)
    bias = scale * (b - p["mean"]) + p["beta"]                     # (Cout,)
    wmat = w.reshape(cout, k) * scale[:, None]                     # (Cout, K)

    c_pad, k_pad, p_pad = _pad_dims(cout, k, pnum)
    wmat = jnp.pad(wmat, ((0, c_pad - cout), (0, k_pad - k))).astype(jnp.bfloat16)
    pat = jnp.pad(pat, ((0, k_pad - k), (0, p_pad - pnum))).astype(jnp.bfloat16)
    bias = jnp.pad(bias, (0, c_pad - cout)).reshape(c_pad, 1).astype(jnp.float32)

    out = _pallas_matmul_bias(wmat, pat, bias, relu=True)[:cout, :pnum]
    if n == 1:
        return out.reshape(1, cout, h, wdt)
    return out.reshape(cout, n, h, wdt).transpose(1, 0, 2, 3)


# ----------------------------------------------------------------------------
# Plain-JAX glue: maxpool (ceil_mode), bicubic upsample + clamp, side convs
# ----------------------------------------------------------------------------
@jax.jit
def maxpool2(x):
    n, c, h, w = x.shape
    hp, wp = -(-h // 2) * 2, -(-w // 2) * 2
    x = jnp.pad(x, ((0, 0), (0, 0), (0, hp - h), (0, wp - w)),
                constant_values=-jnp.inf)
    x = x.reshape(n, c, hp // 2, 2, wp // 2, 2)
    return jnp.max(x, axis=(3, 5))


def _cubic_weights_indices(in_size, out_size):
    # PyTorch upsample_bicubic2d, align_corners=False, A = -0.75, border clamp.
    a = -0.75
    scale = in_size / out_size
    i = jnp.arange(out_size, dtype=jnp.float32)
    x = (i + 0.5) * scale - 0.5
    x0 = jnp.floor(x)
    t = x - x0

    def cub(s):
        s = jnp.abs(s)
        w1 = ((a + 2.0) * s - (a + 3.0)) * s * s + 1.0
        w2 = (((s - 5.0) * s + 8.0) * s - 4.0) * a
        return jnp.where(s <= 1.0, w1, jnp.where(s < 2.0, w2, 0.0))

    offs = jnp.array([-1.0, 0.0, 1.0, 2.0], dtype=jnp.float32)
    wgt = cub(t[:, None] - offs[None, :])                          # (out, 4)
    idx = jnp.clip(x0[:, None].astype(jnp.int32)
                   + offs[None, :].astype(jnp.int32), 0, in_size - 1)
    return wgt, idx


@jax.jit
def upsample_like(src, tar):
    """Bicubic (align_corners=False) to tar spatial size, then clamp [0, 255]
       -- exactly the reference _upsample_like."""
    out_h, out_w = tar.shape[2], tar.shape[3]
    _, _, h, w = src.shape
    wh, ih = _cubic_weights_indices(h, out_h)
    ww, iw = _cubic_weights_indices(w, out_w)
    g = src[:, :, ih, :]                              # (N, C, out_h, 4, W)
    g = jnp.einsum("ncofw,of->ncow", g, wh)           # (N, C, out_h, W)
    g = g[:, :, :, iw]                                # (N, C, out_h, out_w, 4)
    g = jnp.einsum("ncopf,pf->ncop", g, ww)           # (N, C, out_h, out_w)
    return jnp.clip(g, 0.0, 255.0)


def _conv_xla(x, w, b):
    """Plain Conv2d (same padding, no dilation) for the Cout=1 side/out convs."""
    pad = w.shape[2] // 2
    out = lax.conv_general_dilated(
        x, w, window_strides=(1, 1),
        padding=((pad, pad), (pad, pad)),
        dimension_numbers=("NCHW", "OIHW", "NCHW"))
    return out + b.reshape(1, -1, 1, 1)


# ----------------------------------------------------------------------------
# Parameter initialization (deterministic, synthetic)
# ----------------------------------------------------------------------------
class KeyGen:
    def __init__(self, seed=0):
        self.key = jax.random.PRNGKey(seed)
        self.i = 0

    def next(self):
        self.i += 1
        return jax.random.fold_in(self.key, self.i)


def init_conv(kg, cin, cout, k=3):
    fan_in = cin * k * k
    w = jax.random.normal(kg.next(), (cout, cin, k, k), jnp.float32) / math.sqrt(fan_in)
    b = 0.01 * jax.random.normal(kg.next(), (cout,), jnp.float32)
    return dict(w=w, b=b)


def init_rebnconv(kg, cin, cout):
    p = init_conv(kg, cin, cout, 3)
    p["gamma"] = 1.0 + 0.05 * jax.random.normal(kg.next(), (cout,), jnp.float32)
    p["beta"] = 0.05 * jax.random.normal(kg.next(), (cout,), jnp.float32)
    p["mean"] = 0.05 * jax.random.normal(kg.next(), (cout,), jnp.float32)
    p["var"] = 1.0 + 0.05 * jnp.abs(jax.random.normal(kg.next(), (cout,), jnp.float32))
    return p


def _init_rsu_std(kg, in_ch, mid_ch, out_ch, depth):
    # `depth` encoder convs (with pooling), then a dilated pair, then decoders.
    p = dict(rebnconvin=init_rebnconv(kg, in_ch, out_ch),
             rebnconv1=init_rebnconv(kg, out_ch, mid_ch))
    for i in range(2, depth + 1):
        p[f"rebnconv{i}"] = init_rebnconv(kg, mid_ch, mid_ch)
    p[f"rebnconv{depth + 1}"] = init_rebnconv(kg, mid_ch, mid_ch)
    p[f"rebnconv{depth + 2}"] = init_rebnconv(kg, mid_ch, mid_ch)
    for i in range(depth + 1, 1, -1):
        p[f"rebnconv{i}d"] = init_rebnconv(kg, 2 * mid_ch, mid_ch)
    p["rebnconv1d"] = init_rebnconv(kg, 2 * mid_ch, out_ch)
    return p


def init_rsu7(kg, i, m, o): return _init_rsu_std(kg, i, m, o, 5)
def init_rsu6(kg, i, m, o): return _init_rsu_std(kg, i, m, o, 4)
def init_rsu5(kg, i, m, o): return _init_rsu_std(kg, i, m, o, 3)
def init_rsu4(kg, i, m, o): return _init_rsu_std(kg, i, m, o, 2)


def init_rsu4f(kg, in_ch, mid_ch, out_ch):
    return dict(
        rebnconvin=init_rebnconv(kg, in_ch, out_ch),
        rebnconv1=init_rebnconv(kg, out_ch, mid_ch),
        rebnconv2=init_rebnconv(kg, mid_ch, mid_ch),
        rebnconv3=init_rebnconv(kg, mid_ch, mid_ch),
        rebnconv4=init_rebnconv(kg, mid_ch, mid_ch),
        rebnconv3d=init_rebnconv(kg, 2 * mid_ch, mid_ch),
        rebnconv2d=init_rebnconv(kg, 2 * mid_ch, mid_ch),
        rebnconv1d=init_rebnconv(kg, 2 * mid_ch, out_ch),
    )


def init_rsu89(kg, in_ch, mid_ch, out_ch):
    # live parameters of RSU8 / RSU9; the reference's dead branches
    # (rebnconv8/9, rebnconv8d/7d) never reach the output and are skipped.
    p = dict(rebnconvin=init_rebnconv(kg, in_ch, out_ch),
             rebnconv1=init_rebnconv(kg, out_ch, mid_ch))
    for i in range(2, 8):
        p[f"rebnconv{i}"] = init_rebnconv(kg, mid_ch, mid_ch)
    for i in range(6, 1, -1):
        p[f"rebnconv{i}d"] = init_rebnconv(kg, 2 * mid_ch, mid_ch)
    p["rebnconv1d"] = init_rebnconv(kg, 2 * mid_ch, out_ch)
    return p


def init_u2net(kg, in_ch=3, out_ch=1):
    return dict(
        stage0=init_rsu89(kg, in_ch, 32, 64),
        stage0_1=init_rsu89(kg, 64, 32, 128),
        stage1=init_rsu7(kg, 128, 64, 256),
        stage2=init_rsu6(kg, 256, 64, 256),
        stage3=init_rsu5(kg, 256, 128, 512),
        stage5=init_rsu4(kg, 512, 256, 512),
        stage6=init_rsu4f(kg, 512, 256, 1024),
        stage7=init_rsu4f(kg, 1024, 512, 2048),
        stage6d=init_rsu4f(kg, 3072, 512, 1280),
        stage5d=init_rsu4(kg, 1792, 256, 640),
        stage3d=init_rsu5(kg, 1152, 64, 640),
        stage2d=init_rsu6(kg, 896, 64, 320),
        stage1d=init_rsu7(kg, 576, 64, 160),
        stage0_1d=init_rsu89(kg, 288, 64, 80),
        stage0d=init_rsu89(kg, 144, 32, 40),
        side0=init_conv(kg, 40, out_ch, 3),
        side0_1=init_conv(kg, 80, out_ch, 3),
        side1=init_conv(kg, 160, out_ch, 3),
        side2=init_conv(kg, 320, out_ch, 3),
        side3=init_conv(kg, 640, out_ch, 3),
        side5=init_conv(kg, 640, out_ch, 3),
        side6=init_conv(kg, 1280, out_ch, 3),
        outconv=init_conv(kg, 7, out_ch, 1),
    )


# ----------------------------------------------------------------------------
# RSU forward passes
# ----------------------------------------------------------------------------
def _rsu_std(p, x, depth):
    hxin = rebnconv(p["rebnconvin"], x, dirate=1)
    enc = []
    hx = hxin
    for i in range(1, depth + 1):
        hi = rebnconv(p[f"rebnconv{i}"], hx, dirate=1)
        enc.append(hi)
        hx = maxpool2(hi)
    hd1 = rebnconv(p[f"rebnconv{depth + 1}"], hx, dirate=2)
    hd2 = rebnconv(p[f"rebnconv{depth + 2}"], hd1, dirate=2)
    hxd = rebnconv(p[f"rebnconv{depth + 1}d"],
                   jnp.concatenate([hd2, hd1], axis=1), dirate=1)
    for i in range(depth, 1, -1):
        up = upsample_like(hxd, enc[i - 1])
        hxd = rebnconv(p[f"rebnconv{i}d"],
                       jnp.concatenate([up, enc[i - 1]], axis=1), dirate=1)
    up = upsample_like(hxd, enc[0])
    hx1d = rebnconv(p["rebnconv1d"],
                    jnp.concatenate([up, enc[0]], axis=1), dirate=1)
    return hx1d + hxin


def rsu7(p, x): return _rsu_std(p, x, 5)
def rsu6(p, x): return _rsu_std(p, x, 4)
def rsu5(p, x): return _rsu_std(p, x, 3)
def rsu4(p, x): return _rsu_std(p, x, 2)


def rsu4f(p, x):
    hxin = rebnconv(p["rebnconvin"], x, dirate=1)
    hx1 = rebnconv(p["rebnconv1"], hxin, dirate=1)
    hx2 = rebnconv(p["rebnconv2"], hx1, dirate=2)
    hx3 = rebnconv(p["rebnconv3"], hx2, dirate=4)
    hx4 = rebnconv(p["rebnconv4"], hx3, dirate=8)
    hx3d = rebnconv(p["rebnconv3d"], jnp.concatenate([hx4, hx3], 1), dirate=4)
    hx2d = rebnconv(p["rebnconv2d"], jnp.concatenate([hx3d, hx2], 1), dirate=2)
    hx1d = rebnconv(p["rebnconv1d"], jnp.concatenate([hx2d, hx1], 1), dirate=1)
    return hx1d + hxin


def _rsu_pool_of_hx5(p, x, conv7_dirate):
    # shared body of RSU8 / RSU9; reproduces the reference quirk that pool6
    # (and pool7) are applied to hx5, and that hx6d consumes hx7 directly.
    hxin = rebnconv(p["rebnconvin"], x, dirate=1)
    hx1 = rebnconv(p["rebnconv1"], hxin, dirate=1)
    hx2 = rebnconv(p["rebnconv2"], maxpool2(hx1), dirate=1)
    hx3 = rebnconv(p["rebnconv3"], maxpool2(hx2), dirate=1)
    hx4 = rebnconv(p["rebnconv4"], maxpool2(hx3), dirate=1)
    hx5 = rebnconv(p["rebnconv5"], maxpool2(hx4), dirate=1)
    p5 = maxpool2(hx5)                       # pool5(hx5) == pool6(hx5)
    hx6 = rebnconv(p["rebnconv6"], p5, dirate=1)
    hx7 = rebnconv(p["rebnconv7"], p5, dirate=conv7_dirate)
    # reference's hx8/hx9/hx8d/hx7d branches are dead code -> skipped.
    hx6d = rebnconv(p["rebnconv6d"], jnp.concatenate([hx7, hx6], 1), dirate=1)
    hx6dup = upsample_like(hx6d, hx5)
    hx5d = rebnconv(p["rebnconv5d"], jnp.concatenate([hx6dup, hx5], 1), dirate=1)
    hx5dup = upsample_like(hx5d, hx4)
    hx4d = rebnconv(p["rebnconv4d"], jnp.concatenate([hx5dup, hx4], 1), dirate=1)
    hx4dup = upsample_like(hx4d, hx3)
    hx3d = rebnconv(p["rebnconv3d"], jnp.concatenate([hx4dup, hx3], 1), dirate=1)
    hx3dup = upsample_like(hx3d, hx2)
    hx2d = rebnconv(p["rebnconv2d"], jnp.concatenate([hx3dup, hx2], 1), dirate=1)
    hx2dup = upsample_like(hx2d, hx1)
    hx1d = rebnconv(p["rebnconv1d"], jnp.concatenate([hx2dup, hx1], 1), dirate=1)
    return hx1d + hxin


def rsu8(p, x): return _rsu_pool_of_hx5(p, x, 2)   # RSU8.rebnconv7 has dirate=2
def rsu9(p, x): return _rsu_pool_of_hx5(p, x, 1)   # RSU9.rebnconv7 has dirate=1


# ----------------------------------------------------------------------------
# Side heads (Cout=1 convs + 1x1 outconv) -> XLA, one jitted program
# ----------------------------------------------------------------------------
@jax.jit
def _side_heads(hp, hx0d, hx0_1d, hx1d, hx2d, hx3d, hx5d, hx6d):
    d0 = _conv_xla(hx0d, hp["side0"]["w"], hp["side0"]["b"])
    d0_1 = upsample_like(_conv_xla(hx0_1d, hp["side0_1"]["w"], hp["side0_1"]["b"]), d0)
    d1 = upsample_like(_conv_xla(hx1d, hp["side1"]["w"], hp["side1"]["b"]), d0_1)
    d2 = upsample_like(_conv_xla(hx2d, hp["side2"]["w"], hp["side2"]["b"]), d1)
    d3 = upsample_like(_conv_xla(hx3d, hp["side3"]["w"], hp["side3"]["b"]), d2)
    d5 = upsample_like(_conv_xla(hx5d, hp["side5"]["w"], hp["side5"]["b"]), d1)
    d6 = upsample_like(_conv_xla(hx6d, hp["side6"]["w"], hp["side6"]["b"]), d1)
    d0_ = _conv_xla(jnp.concatenate([d0, d0_1, d1, d2, d3, d5, d6], 1),
                    hp["outconv"]["w"], hp["outconv"]["b"])
    return tuple(jax.nn.sigmoid(d) for d in (d0_, d0, d0_1, d1, d2, d3, d5, d6))


# ----------------------------------------------------------------------------
# U2NET forward
# ----------------------------------------------------------------------------
def u2net_forward(p, x):
    hx0 = rsu9(p["stage0"], x)
    hx = maxpool2(hx0)
    hx0_1 = rsu8(p["stage0_1"], hx)
    hx = maxpool2(hx0_1)
    hx1 = rsu7(p["stage1"], hx)
    hx = maxpool2(hx1)
    hx2 = rsu6(p["stage2"], hx)
    hx = maxpool2(hx2)
    hx3 = rsu5(p["stage3"], hx)
    hx = maxpool2(hx3)
    hx5 = rsu4(p["stage5"], hx)
    hx = maxpool2(hx5)
    hx6 = rsu4f(p["stage6"], hx)
    hx = maxpool2(hx6)
    hx7 = rsu4f(p["stage7"], hx)

    hx7up = upsample_like(hx7, hx6)
    hx6d = rsu4f(p["stage6d"], jnp.concatenate([hx7up, hx6], 1))
    hx6dup = upsample_like(hx6d, hx5)
    hx5d = rsu4(p["stage5d"], jnp.concatenate([hx6dup, hx5], 1))
    hx5dup = upsample_like(hx5d, hx3)
    hx3d = rsu5(p["stage3d"], jnp.concatenate([hx5dup, hx3], 1))
    hx3dup = upsample_like(hx3d, hx2)
    hx2d = rsu6(p["stage2d"], jnp.concatenate([hx3dup, hx2], 1))
    hx2dup = upsample_like(hx2d, hx1)
    hx1d = rsu7(p["stage1d"], jnp.concatenate([hx2dup, hx1], 1))
    hx1dup = upsample_like(hx1d, hx0_1)
    hx0_1d = rsu8(p["stage0_1d"], jnp.concatenate([hx1dup, hx0_1], 1))
    hx0_1dup = upsample_like(hx0_1d, hx0)
    hx0d = rsu9(p["stage0d"], jnp.concatenate([hx0_1dup, hx0], 1))

    hp = {k: p[k] for k in ("side0", "side0_1", "side1", "side2", "side3",
                            "side5", "side6", "outconv")}
    return _side_heads(hp, hx0d, hx0_1d, hx1d, hx2d, hx3d, hx5d, hx6d)


# ----------------------------------------------------------------------------
if __name__ == "__main__":
    key = jax.random.PRNGKey(0)
    x = jax.random.uniform(key, (1, 3, 32, 32), jnp.float32)   # NCHW like PyTorch

    params = init_u2net(KeyGen(0), in_ch=3, out_ch=1)

    outs = u2net_forward(params, x)
    outs = jax.block_until_ready(outs)

    assert len(outs) == 8
    for o in outs:
        assert o.shape == (1, 1, 32, 32), o.shape
        assert o.dtype == jnp.float32
        assert bool(jnp.all(jnp.isfinite(o)))

    print("KERNEL_OK")
</pallas_src>

<mosaic_0001>
module attributes {stable_mosaic.version = 11 : i64} {
  func.func @_mm_bias_kernel(%arg0: i32, %arg1: i32, %arg2: i32, %arg3: memref<64x32xbf16, #tpu.memory_space<vmem>>, %arg4: memref<32x512xbf16, #tpu.memory_space<vmem>>, %arg5: memref<64x1xf32, #tpu.memory_space<vmem>>, %arg6: memref<64x512xf32, #tpu.memory_space<vmem>>, %arg7: memref<64x512xf32, #tpu.memory_space<vmem>>) attributes {dimension_semantics = [#tpu.dimension_semantics<parallel>, #tpu.dimension_semantics<parallel>, #tpu.dimension_semantics<arbitrary>], iteration_bounds = array<i64: 1, 2, 1>, scalar_prefetch = 0 : i64, scratch_operands = 1 : i64, tpu.core_type = #tpu.core_type<tc>, window_params = [{transform_indices = @transform_0, window_bounds = array<i64: 64, 32>}, {transform_indices = @transform_1, window_bounds = array<i64: 32, 512>}, {transform_indices = @transform_2, window_bounds = array<i64: 64, 1>}, {transform_indices = @transform_3, window_bounds = array<i64: 64, 512>}]} {
    %c0_i32 = arith.constant 0 : i32
    %0 = arith.cmpi eq, %arg2, %c0_i32 : i32
    %1 = arith.extui %0 : i1 to i32
    %c0_i32_0 = arith.constant 0 : i32
    %2 = arith.cmpi ne, %1, %c0_i32_0 : i32
    scf.if %2 {
      %cst_10 = arith.constant 0.000000e+00 : f32
      %12 = vector.broadcast %cst_10 : f32 to vector<64x512xf32>
      %c0_11 = arith.constant 0 : index
      %c0_12 = arith.constant 0 : index
      %13 = vector.load %arg7[%c0_11, %c0_12] : memref<64x512xf32, #tpu.memory_space<vmem>>, vector<64x512xf32>
      tpu.vector_store %arg7[%c0_11, %c0_12], %12 {strides = array<i32>} : memref<64x512xf32, #tpu.memory_space<vmem>>, vector<64x512xf32>,
    } else {
    }
    %c0 = arith.constant 0 : index
    %c0_1 = arith.constant 0 : index
    %3 = vector.load %arg7[%c0, %c0_1] : memref<64x512xf32, #tpu.memory_space<vmem>>, vector<64x512xf32>
    %c0_2 = arith.constant 0 : index
    %c0_3 = arith.constant 0 : index
    %4 = vector.load %arg3[%c0_2, %c0_3] : memref<64x32xbf16, #tpu.memory_space<vmem>>, vector<64x32xbf16>
    %c0_4 = arith.constant 0 : index
    %c0_5 = arith.constant 0 : index
    %5 = vector.load %arg4[%c0_4, %c0_5] : memref<32x512xbf16, #tpu.memory_space<vmem>>, vector<32x512xbf16>
    %cst = arith.constant dense<0.000000e+00> : vector<64x512xf32>
    %6 = tpu.matmul %4, %5, %cst {dimension_numbers = #tpu.dot_dimension_numbers<[1], [0], [0], [1], [0, 0, 1, 1], [], []>} : vector<64x32xbf16>, vector<32x512xbf16>, vector<64x512xf32> -> vector<64x512xf32>
    %7 = arith.addf %3, %6 : vector<64x512xf32>
    %c0_6 = arith.constant 0 : index
    %c0_7 = arith.constant 0 : index
    %8 = vector.load %arg7[%c0_6, %c0_7] : memref<64x512xf32, #tpu.memory_space<vmem>>, vector<64x512xf32>
    tpu.vector_store %arg7[%c0_6, %c0_7], %7 {strides = array<i32>} : memref<64x512xf32, #tpu.memory_space<vmem>>, vector<64x512xf32>,
    %c0_i32_8 = arith.constant 0 : i32
    %9 = arith.cmpi eq, %arg2, %c0_i32_8 : i32
    %10 = arith.extui %9 : i1 to i32
    %c0_i32_9 = arith.constant 0 : i32
    %11 = arith.cmpi ne, %10, %c0_i32_9 : i32
    scf.if %11 {
      %c0_10 = arith.constant 0 : index
      %c0_11 = arith.constant 0 : index
      %12 = vector.load %arg7[%c0_10, %c0_11] : memref<64x512xf32, #tpu.memory_space<vmem>>, vector<64x512xf32>
      %c0_12 = arith.constant 0 : index
      %c0_13 = arith.constant 0 : index
      %13 = vector.load %arg5[%c0_12, %c0_13] : memref<64x1xf32, #tpu.memory_space<vmem>>, vector<64x1xf32>
      %14 = vector.broadcast %13 : vector<64x1xf32> to vector<64x512xf32>
      %15 = arith.addf %12, %14 : vector<64x512xf32>
      %cst_14 = arith.constant 0.000000e+00 : f32
      %16 = vector.broadcast %cst_14 : f32 to vector<64x512xf32>
      %17 = arith.maximumf %15, %16 : vector<64x512xf32>
      %c0_15 = arith.constant 0 : index
      %c0_16 = arith.constant 0 : index
      %18 = vector.load %arg6[%c0_15, %c0_16] : memref<64x512xf32, #tpu.memory_space<vmem>>, vector<64x512xf32>
      tpu.vector_store %arg6[%c0_15, %c0_16], %17 {strides = array<i32>} : memref<64x512xf32, #tpu.memory_space<vmem>>, vector<64x512xf32>,
    } else {
    }
    return
  }
  func.func @transform_0(%arg0: i32, %arg1: i32, %arg2: i32) -> (i32, i32) {
    %c0_i32 = arith.constant 0 : i32
    return %arg0, %arg2 : i32, i32
  }
  func.func @transform_1(%arg0: i32, %arg1: i32, %arg2: i32) -> (i32, i32) {
    %c0_i32 = arith.constant 0 : i32
    return %arg2, %arg1 : i32, i32
  }
  func.func @transform_2(%arg0: i32, %arg1: i32, %arg2: i32) -> (i32, i32) {
    %c0_i32 = arith.constant 0 : i32
    %c0_i32_0 = arith.constant 0 : i32
    return %arg0, %c0_i32 : i32, i32
  }
  func.func @transform_3(%arg0: i32, %arg1: i32, %arg2: i32) -> (i32, i32) {
    %c0_i32 = arith.constant 0 : i32
    return %arg0, %arg1 : i32, i32
  }
}

</mosaic_0001>

<llo_original>
// kernel: rebnconv.1
$region0: #{rebnconv.1}
  #allocation0 [shape = 'u32[]', space=smem, size = 0x4, offset = 0x4, fixed_abs, tag = 'smem constant byte address 0x4 - core index']
  #allocation1 [shape = 'u32[72,128]{1,0:T(1,128)}', space=vmem, size = 0x9000, scoped, tag = 'internal scratch']
  #allocation2 [shape = 'f32[64,512]{1,0:T(8,128)}', space=vmem, size = 0x20000, scoped, tag = 'scratch operand']
  %s0 = inlined_call_operand.vmem [shape: bf16[64,32], index: 0, kind: input, shape index: {}]
  %s1 = inlined_call_operand.vmem [shape: bf16[32,1024], index: 1, kind: input, shape index: {}]
  %s2 = inlined_call_operand.vmem [shape: f32[64,1], index: 2, kind: input, shape index: {}]
  %s3 = inlined_call_operand.vmem [shape: f32[64,1024], index: 3, kind: output, shape index: {}]
  %s4 = sld [smem:[#allocation0]]
  $region95: #{rebnconv.1} parent=0
    _
  %s6 = ssub.s32 1, %s4
  %s7 = scalar_select 0, %s6, %s4
  $region1: #{rebnconv.1} parent=0
    #allocation3 [shape = 'u8[65536]{0}', space=vmem, size = 0x10000, scoped, tag = 'input window, operand 1']
    #allocation4 [shape = 'u8[262144]{0}', space=vmem, size = 0x40000, scoped, tag = 'output window, operand 0']
    loop: start=0, step=1, limit=4
    $region2: #{rebnconv.1} parent=1 // loop_pre_header
      _
    $region3: #{rebnconv.1} parent=1 // loop_header
      %s9 = sphi 0, %s13
      %p10 = scmp.ge.s32.totalorder %s9, 4
      %s16 = sphi 0, %s35
      %s17 = sphi 0, %s31
      %s18 = sphi 0, %s27
      %s19 = sphi 0, %s16
      %s20 = sphi 0, %s17
      %s21 = sphi 0, %s18
      %s22 = sphi 0, %s19
      %s23 = sphi 0, %s20
      %s24 = sphi 0, %s21
      %s40 = sphi 0, %s42
      %s43 = sphi 0, %s40
      %s44 = sphi 0, %s43
      %s60 = sphi 0, %s44
      %s68 = sphi 0, %s70
      %s71 = sphi 0, %s68
      %s72 = sphi 0, %s71
      %s88 = sphi 0, %s72
      %s94 = sphi 0, %s96
      %s97 = sphi 0, %s94
      %s98 = sphi 0, %s97
      %s114 = sphi 0, %s98
      %s122 = sphi 0, %s124
      %s125 = sphi 0, %s122
      %s126 = sphi 0, %s125
      %s142 = sphi 0, %s126
    $region4: #{rebnconv.1} parent=1 // loop_header_branch
      %12 = sbr.rel (%p10) target = $region8
    $region5: #{rebnconv.1} parent=1 // loop_body
      %s14 = ssub.s32 %s9, 1
      %s15 = ssub.s32 %s9, 2
      %s25 = sadd.s32 1, %s18
      %p26 = scmp.ge.s32.totalorder %s25, 1
      %s27 = scalar_select %p26, 0, %s25
      %s28 = sadd.s32 1, %s17
      %s29 = scalar_select %p26, %s28, %s17
      %p30 = scmp.ge.s32.totalorder %s29, 2
      %s31 = scalar_select %p30, 0, %s29
      %s32 = sadd.s32 1, %s16
      %s33 = scalar_select %p30, %s32, %s16
      %p34 = scmp.ge.s32.totalorder %s33, 1
      %s35 = scalar_select %p34, 0, %s33
      %s36 = ssub.s32 %s16, %s35
      %s37 = ssub.s32 %s18, %s27
      %s38 = sor.u32 %s36, %s37
      %p39 = scmp.eq.s32.totalorder %s38, 0
      %s41 = sadd.s32 %s40, 1
      %s42 = scalar_select %p39, %s40, %s41
      %p45 = pneg %p39
      %p46 = scmp.eq.s32.totalorder %s9, 1
      %p47 = por %p45, %p46
      %p48 = scmp.ne.s32.totalorder %s40, %s43
      %p49 = scmp.eq.s32.totalorder %s9, 0
      %p50 = por %p48, %p49
      %p51 = scmp.ne.s32.totalorder %s40, %s43
      %p52 = scmp.eq.s32.totalorder %s14, 1
      %p53 = por %p51, %p52
      %p54 = scmp.ne.s32.totalorder %s43, %s44
      %p55 = scmp.eq.s32.totalorder %s14, 0
      %p56 = por %p54, %p55
      %p57 = scmp.ne.s32.totalorder %s43, %s44
      %p58 = scmp.eq.s32.totalorder %s15, 1
      %p59 = por %p57, %p58
      %p61 = scmp.ne.s32.totalorder %s44, %s60
      %p62 = scmp.eq.s32.totalorder %s15, 0
      %p63 = por %p61, %p62
      %s64 = ssub.s32 %s18, %s27
      %s65 = ssub.s32 %s17, %s31
      %s66 = sor.u32 %s64, %s65
      %p67 = scmp.eq.s32.totalorder %s66, 0
      %s69 = sadd.s32 %s68, 1
      %s70 = scalar_select %p67, %s68, %s69
      %p73 = pneg %p67
      %p74 = scmp.eq.s32.totalorder %s9, 1
      %p75 = por %p73, %p74
      %p76 = scmp.ne.s32.totalorder %s68, %s71
      %p77 = scmp.eq.s32.totalorder %s9, 0
      %p78 = por %p76, %p77
      %p79 = scmp.ne.s32.totalorder %s68, %s71
      %p80 = scmp.eq.s32.totalorder %s14, 1
      %p81 = por %p79, %p80
      %p82 = scmp.ne.s32.totalorder %s71, %s72
      %p83 = scmp.eq.s32.totalorder %s14, 0
      %p84 = por %p82, %p83
      %p85 = scmp.ne.s32.totalorder %s71, %s72
      %p86 = scmp.eq.s32.totalorder %s15, 1
      %p87 = por %p85, %p86
      %p89 = scmp.ne.s32.totalorder %s72, %s88
      %p90 = scmp.eq.s32.totalorder %s15, 0
      %p91 = por %p89, %p90
      %s92 = ssub.s32 %s16, %s35
      %p93 = scmp.eq.s32.totalorder %s92, 0
      %s95 = sadd.s32 %s94, 1
      %s96 = scalar_select %p93, %s94, %s95
      %p99 = pneg %p93
      %p100 = scmp.eq.s32.totalorder %s9, 1
      %p101 = por %p99, %p100
      %p102 = scmp.ne.s32.totalorder %s94, %s97
      %p103 = scmp.eq.s32.totalorder %s9, 0
      %p104 = por %p102, %p103
      %p105 = scmp.ne.s32.totalorder %s94, %s97
      %p106 = scmp.eq.s32.totalorder %s14, 1
      %p107 = por %p105, %p106
      %p108 = scmp.ne.s32.totalorder %s97, %s98
      %p109 = scmp.eq.s32.totalorder %s14, 0
      %p110 = por %p108, %p109
      %p111 = scmp.ne.s32.totalorder %s97, %s98
      %p112 = scmp.eq.s32.totalorder %s15, 1
      %p113 = por %p111, %p112
      %p115 = scmp.ne.s32.totalorder %s98, %s114
      %p116 = scmp.eq.s32.totalorder %s15, 0
      %p117 = por %p115, %p116
      %s118 = ssub.s32 %s16, %s35
      %s119 = ssub.s32 %s17, %s31
      %s120 = sor.u32 %s118, %s119
      %p121 = scmp.eq.s32.totalorder %s120, 0
      %s123 = sadd.s32 %s122, 1
      %s124 = scalar_select %p121, %s122, %s123
      %p127 = pneg %p121
      %p128 = scmp.eq.s32.totalorder %s9, 1
      %p129 = por %p127, %p128
      %p130 = scmp.ne.s32.totalorder %s122, %s125
      %p131 = scmp.eq.s32.totalorder %s9, 0
      %p132 = por %p130, %p131
      %p133 = scmp.ne.s32.totalorder %s122, %s125
      %p134 = scmp.eq.s32.totalorder %s14, 1
      %p135 = por %p133, %p134
      %p136 = scmp.ne.s32.totalorder %s125, %s126
      %p137 = scmp.eq.s32.totalorder %s14, 0
      %p138 = por %p136, %p137
      %p139 = scmp.ne.s32.totalorder %s125, %s126
      %p140 = scmp.eq.s32.totalorder %s15, 1
      %p141 = por %p139, %p140
      %p143 = scmp.ne.s32.totalorder %s126, %s142
      %p144 = scmp.eq.s32.totalorder %s15, 0
      %p145 = por %p143, %p144
      %p146 = scmp.le.s32.totalorder 1, %s9
      %p147 = scmp.lt.s32.totalorder %s9, 3
      %p148 = pnand %p146, %p147
      %p149 = pneg %p148
      // Predicated region
      $region9: #{rebnconv.1} parent=5 // pred_check
        _
      $region10: #{rebnconv.1} parent=5 // pred_check_branch
        %151 = sbr.rel (%p148) target = $region12
      $region11: #{rebnconv.1} parent=5 // pred_region
        %s152 = ssub.s32 %s9, 1
        // Predicated region
        $region13: #{rebnconv.1} parent=11 // pred_check
          %p153 = pneg %p56
        $region14: #{rebnconv.1} parent=11 // pred_check_branch
          %155 = sbr.rel (%p153) target = $region16
        $region15: #{rebnconv.1} parent=11 // pred_region
          %s156 = smul.u32 8, %s19
          %p157 = scmp.lt.s32.totalorder %s156, 7
          %s158 = scalar_select %p157, %s156, 7
          %p159 = scmp.lt.s32.totalorder %s21, 0
          %s160 = scalar_select %p159, %s21, 0
          %s161 = sadd.s32 %s160, %s158
          %s162 = smul.addr %s161, 4
          %s163 = scalar_lea.vmem %s0, %s162
          %s164 = smul.u32 8, %s19
        $region16: #{rebnconv.1} parent=11 // pred_fallthru
          _
        // Predicated region
        $region17: #{rebnconv.1} parent=11 // pred_check
          %p165 = pneg %p110
        $region18: #{rebnconv.1} parent=11 // pred_check_branch
          %167 = sbr.rel (%p165) target = $region20
        $region19: #{rebnconv.1} parent=11 // pred_region
          %s168 = smul.u32 8, %s19
          %p169 = scmp.lt.s32.totalorder %s168, 7
          %s170 = scalar_select %p169, %s168, 7
          %s171 = smul.addr %s170, 8
          %s172 = scalar_lea.vmem %s2, %s171
          %s173 = smul.u32 8, %s19
        $region20: #{rebnconv.1} parent=11 // pred_fallthru
          _
      $region12: #{rebnconv.1} parent=5 // pred_fallthru
        _
      %p174 = scmp.lt.s32.totalorder %s9, 2
      // Predicated region
      $region21: #{rebnconv.1} parent=5 // pred_check
        %p175 = pneg %p174
      $region22: #{rebnconv.1} parent=5 // pred_check_branch
        %177 = sbr.rel (%p175) target = $region24
      $region23: #{rebnconv.1} parent=5 // pred_region
        // Predicated region
        $region25: #{rebnconv.1} parent=23 // pred_check
          %p178 = pneg %p78
        $region26: #{rebnconv.1} parent=23 // pred_check_branch
          %180 = sbr.rel (%p178) target = $region28
        $region27: #{rebnconv.1} parent=23 // pred_region
          %s181 = sand.u32 %s68, 1
          %s182 = sand.u32 %s68, 1
          %s183 = smul.addr %s182, 64
          %s184 = scalar_lea.vmem [#allocation3], %s183
          %s185 = smul.u32 4, %s18
          %s186 = smul.u32 4, %s17
          %s187 = smul.addr %s185, 8
          %s188 = sadd.s32 %s186, %s187
          %s189 = smul.addr %s188, 4
          %s190 = scalar_lea.vmem %s1, %s189
          // Predicated region
          $region29: #{rebnconv.1} parent=27 // pred_check
            _
          $region30: #{rebnconv.1} parent=27 // pred_check_branch
            %192 = sbr.rel (0) target = $region32
          $region31: #{rebnconv.1} parent=27 // pred_region
            // Predicated region
            $region33: #{rebnconv.1} parent=31 // pred_check
              _
            $region34: #{rebnconv.1} parent=31 // pred_check_branch
              %194 = sbr.rel (0) target = $region36
            $region35: #{rebnconv.1} parent=31 // pred_region
              loop: start=0, step=1, limit=1
              $region37: #{rebnconv.1} parent=35 // loop_pre_header
                _
              $region38: #{rebnconv.1} parent=35 // loop_header
                %s196 = sphi 0, %s200
                %p197 = scmp.ge.s32.totalorder %s196, 1
                %s201 = sphi %s190, %s190
                %s202 = sphi %s184, %s184
              $region39: #{rebnconv.1} parent=35 // loop_header_branch
                %199 = sbr.rel (%p197) target = $region43
              $region40: #{rebnconv.1} parent=35 // loop_body
                %v203 = vld [vmem:[%s201] sm:$0xff]
                %204 = vst [vmem:[%s202] sm:$0xff] %v203
                %v205 = vld [vmem:[%s201 + $0x8] sm:$0xff]
                %206 = vst [vmem:[%s202 + $0x8] sm:$0xff] %v205
                %v207 = vld [vmem:[%s201 + $0x20] sm:$0xff]
                %208 = vst [vmem:[%s202 + $0x10] sm:$0xff] %v207
                %v209 = vld [vmem:[%s201 + $0x28] sm:$0xff]
                %210 = vst [vmem:[%s202 + $0x18] sm:$0xff] %v209
                %v211 = vld [vmem:[%s201 + $0x40] sm:$0xff]
                %212 = vst [vmem:[%s202 + $0x20] sm:$0xff] %v211
                %v213 = vld [vmem:[%s201 + $0x48] sm:$0xff]
                %214 = vst [vmem:[%s202 + $0x28] sm:$0xff] %v213
                %v215 = vld [vmem:[%s201 + $0x60] sm:$0xff]
                %216 = vst [vmem:[%s202 + $0x30] sm:$0xff] %v215
                %v217 = vld [vmem:[%s201 + $0x68] sm:$0xff]
                %218 = vst [vmem:[%s202 + $0x38] sm:$0xff] %v217
              $region41: #{rebnconv.1} parent=35 // loop_footer
                %s200 = sadd.s32 1, %s196
              $region42: #{rebnconv.1} parent=35 // loop_footer_branch
                %195 = sbr.rel target = $region38
              $region43: #{rebnconv.1} parent=35 // loop_exit
                _
            $region36: #{rebnconv.1} parent=31 // pred_fallthru
              _
            // Predicated region
            $region44: #{rebnconv.1} parent=31 // pred_check
              _
            $region45: #{rebnconv.1} parent=31 // pred_check_branch
              %220 = sbr.rel target = $region47
            $region46: #{rebnconv.1} parent=31 // pred_region
              _
            $region47: #{rebnconv.1} parent=31 // pred_fallthru
              _
          $region32: #{rebnconv.1} parent=27 // pred_fallthru
            _
          %221 = vnop
        $region28: #{rebnconv.1} parent=23 // pred_fallthru
          _
      $region24: #{rebnconv.1} parent=5 // pred_fallthru
        _
      %p222 = scmp.le.s32.totalorder 1, %s9
      %p223 = scmp.lt.s32.totalorder %s9, 3
      %p224 = pnand %p222, %p223
      %p225 = pneg %p224
      // Predicated region
      $region48: #{rebnconv.1} parent=5 // pred_check
        _
      $region49: #{rebnconv.1} parent=5 // pred_check_branch
        %227 = sbr.rel (%p224) target = $region51
      $region50: #{rebnconv.1} parent=5 // pred_region
        %s228 = ssub.s32 %s9, 1
        %s229 = sand.u32 %s71, 1
        %s230 = sand.u32 %s71, 1
        %s231 = smul.addr %s230, 64
        %s232 = scalar_lea.vmem [#allocation3], %s231
        // Predicated region
        $region52: #{rebnconv.1} parent=50 // pred_check
          %p233 = pneg %p84
        $region53: #{rebnconv.1} parent=50 // pred_check_branch
          %235 = sbr.rel (%p233) target = $region55
        $region54: #{rebnconv.1} parent=50 // pred_region
          _
        $region55: #{rebnconv.1} parent=50 // pred_fallthru
          _
        %s236 = smul.u32 8, %s19
        %p237 = scmp.lt.s32.totalorder %s236, 7
        %s238 = scalar_select %p237, %s236, 7
        %p239 = scmp.lt.s32.totalorder %s21, 0
        %s240 = scalar_select %p239, %s21, 0
        %s241 = sadd.s32 %s240, %s238
        %s242 = smul.addr %s241, 4
        %s243 = scalar_lea.vmem %s0, %s242
        %p244 = pneg %p56
        %p245 = pneg %p53
        %s246 = sand.u32 %s71, 1
        %s247 = sand.u32 %s71, 1
        %s248 = smul.addr %s247, 64
        %s249 = scalar_lea.vmem [#allocation3], %s248
        %p250 = pneg %p84
        %p251 = pneg %p81
        %s252 = smul.u32 8, %s19
        %p253 = scmp.lt.s32.totalorder %s252, 7
        %s254 = scalar_select %p253, %s252, 7
        %s255 = smul.addr %s254, 8
        %s256 = scalar_lea.vmem %s2, %s255
        %p257 = pneg %p110
        %p258 = pneg %p107
        %p259 = pneg %p138
        %p260 = pneg %p135
        %s261 = sand.u32 %s125, 1
        %s262 = sand.u32 %s125, 1
        %s263 = smul.addr %s262, 256
        %s264 = scalar_lea.vmem [#allocation4], %s263
        %s265 = smul.u32 8, %s19
        %p266 = scmp.lt.s32.totalorder %s265, 7
        %s267 = scalar_select %p266, %s265, 7
        %p268 = scmp.lt.s32.totalorder %s21, 0
        %s269 = scalar_select %p268, %s21, 0
        %s270 = sadd.s32 %s269, %s267
        %s271 = smul.addr %s270, 4
        %s272 = scalar_lea.vmem %s0, %s271
        %s273 = smul.u32 8, %s19
        %s274 = smul.u32 4, %s21
        %s275 = smul.u32 4, %s20
        %s276 = smul.u32 8, %s19
        %p277 = scmp.lt.s32.totalorder %s276, 7
        %s278 = scalar_select %p277, %s276, 7
        %s279 = smul.addr %s278, 8
        %s280 = scalar_lea.vmem %s2, %s279
        %s281 = smul.u32 8, %s19
        %s282 = smul.u32 8, %s19
        %s283 = smul.u32 4, %s20
        %p285 = scmp.eq.s32.totalorder %s21, 0
        // Predicated region
        $region56: #{rebnconv.1} parent=50 // pred_check
          %p286 = pneg %p285
        $region57: #{rebnconv.1} parent=50 // pred_check_branch
          %288 = sbr.rel (%p286) target = $region59
        $region58: #{rebnconv.1} parent=50 // pred_region
          %289 = vst [vmem:[#allocation2] sm:$0xff] 0.0
          %290 = vst [vmem:[#allocation2 + $0x8] sm:$0xff] 0.0
          %291 = vst [vmem:[#allocation2 + $0x10] sm:$0xff] 0.0
          %292 = vst [vmem:[#allocation2 + $0x18] sm:$0xff] 0.0
          %293 = vst [vmem:[#allocation2 + $0x20] sm:$0xff] 0.0
          %294 = vst [vmem:[#allocation2 + $0x28] sm:$0xff] 0.0
          %295 = vst [vmem:[#allocation2 + $0x30] sm:$0xff] 0.0
          %296 = vst [vmem:[#allocation2 + $0x38] sm:$0xff] 0.0
          %297 = vst [vmem:[#allocation2 + $0x40] sm:$0xff] 0.0
          %298 = vst [vmem:[#allocation2 + $0x48] sm:$0xff] 0.0
          %299 = vst [vmem:[#allocation2 + $0x50] sm:$0xff] 0.0
          %300 = vst [vmem:[#allocation2 + $0x58] sm:$0xff] 0.0
          %301 = vst [vmem:[#allocation2 + $0x60] sm:$0xff] 0.0
          %302 = vst [vmem:[#allocation2 + $0x68] sm:$0xff] 0.0
          %303 = vst [vmem:[#allocation2 + $0x70] sm:$0xff] 0.0
          %304 = vst [vmem:[#allocation2 + $0x78] sm:$0xff] 0.0
          %305 = vst [vmem:[#allocation2 + $0x80] sm:$0xff] 0.0
          %306 = vst [vmem:[#allocation2 + $0x88] sm:$0xff] 0.0
          %307 = vst [vmem:[#allocation2 + $0x90] sm:$0xff] 0.0
          %308 = vst [vmem:[#allocation2 + $0x98] sm:$0xff] 0.0
          %309 = vst [vmem:[#allocation2 + $0xa0] sm:$0xff] 0.0
          %310 = vst [vmem:[#allocation2 + $0xa8] sm:$0xff] 0.0
          %311 = vst [vmem:[#allocation2 + $0xb0] sm:$0xff] 0.0
          %312 = vst [vmem:[#allocation2 + $0xb8] sm:$0xff] 0.0
          %313 = vst [vmem:[#allocation2 + $0xc0] sm:$0xff] 0.0
          %314 = vst [vmem:[#allocation2 + $0xc8] sm:$0xff] 0.0
          %315 = vst [vmem:[#allocation2 + $0xd0] sm:$0xff] 0.0
          %316 = vst [vmem:[#allocation2 + $0xd8] sm:$0xff] 0.0
          %317 = vst [vmem:[#allocation2 + $0xe0] sm:$0xff] 0.0
          %318 = vst [vmem:[#allocation2 + $0xe8] sm:$0xff] 0.0
          %319 = vst [vmem:[#allocation2 + $0xf0] sm:$0xff] 0.0
          %320 = vst [vmem:[#allocation2 + $0xf8] sm:$0xff] 0.0
        $region59: #{rebnconv.1} parent=50 // pred_fallthru
          _
        %v321 = vld [vmem:[#allocation2] sm:$0xff]
        %v322 = vld [vmem:[#allocation2 + $0x8] sm:$0xff]
        %v323 = vld [vmem:[#allocation2 + $0x10] sm:$0xff]
        %v324 = vld [vmem:[#allocation2 + $0x18] sm:$0xff]
        %v325 = vld [vmem:[#allocation2 + $0x20] sm:$0xff]
        %v326 = vld [vmem:[#allocation2 + $0x28] sm:$0xff]
        %v327 = vld [vmem:[#allocation2 + $0x30] sm:$0xff]
        %v328 = vld [vmem:[#allocation2 + $0x38] sm:$0xff]
        %v329 = vld [vmem:[#allocation2 + $0x40] sm:$0xff]
        %v330 = vld [vmem:[#allocation2 + $0x48] sm:$0xff]
        %v331 = vld [vmem:[#allocation2 + $0x50] sm:$0xff]
        %v332 = vld [vmem:[#allocation2 + $0x58] sm:$0xff]
        %v333 = vld [vmem:[#allocation2 + $0x60] sm:$0xff]
        %v334 = vld [vmem:[#allocation2 + $0x68] sm:$0xff]
        %v335 = vld [vmem:[#allocation2 + $0x70] sm:$0xff]
        %v336 = vld [vmem:[#allocation2 + $0x78] sm:$0xff]
        %v337 = vld [vmem:[#allocation2 + $0x80] sm:$0xff]
        %v338 = vld [vmem:[#allocation2 + $0x88] sm:$0xff]
        %v339 = vld [vmem:[#allocation2 + $0x90] sm:$0xff]
        %v340 = vld [vmem:[#allocation2 + $0x98] sm:$0xff]
        %v341 = vld [vmem:[#allocation2 + $0xa0] sm:$0xff]
        %v342 = vld [vmem:[#allocation2 + $0xa8] sm:$0xff]
        %v343 = vld [vmem:[#allocation2 + $0xb0] sm:$0xff]
        %v344 = vld [vmem:[#allocation2 + $0xb8] sm:$0xff]
        %v345 = vld [vmem:[#allocation2 + $0xc0] sm:$0xff]
        %v346 = vld [vmem:[#allocation2 + $0xc8] sm:$0xff]
        %v347 = vld [vmem:[#allocation2 + $0xd0] sm:$0xff]
        %v348 = vld [vmem:[#allocation2 + $0xd8] sm:$0xff]
        %v349 = vld [vmem:[#allocation2 + $0xe0] sm:$0xff]
        %v350 = vld [vmem:[#allocation2 + $0xe8] sm:$0xff]
        %v351 = vld [vmem:[#allocation2 + $0xf0] sm:$0xff]
        %v352 = vld [vmem:[#allocation2 + $0xf8] sm:$0xff]
        %v353 = vld [vmem:[%s272] sm:$0xf]
        %v354 = vld [vmem:[%s272 + $0x4] sm:$0xf]
        %v355 = vld [vmem:[%s272 + $0x8] sm:$0xf]
        %v356 = vld [vmem:[%s272 + $0xc] sm:$0xf]
        %v357 = vld [vmem:[%s272 + $0x10] sm:$0xf]
        %v358 = vld [vmem:[%s272 + $0x14] sm:$0xf]
        %v359 = vld [vmem:[%s272 + $0x18] sm:$0xf]
        %v360 = vld [vmem:[%s272 + $0x1c] sm:$0xf]
        %v361 = vld [vmem:[%s232] sm:$0xff]
        %v362 = vld [vmem:[%s232 + $0x8] sm:$0xff]
        %v363 = vld [vmem:[%s232 + $0x10] sm:$0xff]
        %v364 = vld [vmem:[%s232 + $0x18] sm:$0xff]
        %v365 = vld [vmem:[%s232 + $0x20] sm:$0xff]
        %v366 = vld [vmem:[%s232 + $0x28] sm:$0xff]
        %v367 = vld [vmem:[%s232 + $0x30] sm:$0xff]
        %v368 = vld [vmem:[%s232 + $0x38] sm:$0xff]
        %v377 = vunpack.c.l.b16 %v353
        %v378 = vunpack.c.l.b16 %v354
        %v379 = vunpack.c.l.b16 %v355
        %v380 = vunpack.c.l.b16 %v356
        %v381 = vunpack.c.l.b16 %v357
        %v382 = vunpack.c.l.b16 %v358
        %v383 = vunpack.c.l.b16 %v359
        %v384 = vunpack.c.l.b16 %v360
        %v385 = vpack.c.b16 %v378, %v377
        %v386 = vpack.c.b16 %v380, %v379
        %v387 = vpack.c.b16 %v382, %v381
        %v388 = vpack.c.b16 %v384, %v383
        %v397 = vunpack.c.l.b16 %v361
        %v398 = vunpack.c.h.b16 %v361
        %v399 = vunpack.c.l.b16 %v362
        %v400 = vunpack.c.h.b16 %v362
        %v401 = vunpack.c.l.b16 %v363
        %v402 = vunpack.c.h.b16 %v363
        %v403 = vunpack.c.l.b16 %v364
        %v404 = vunpack.c.h.b16 %v364
        %v405 = vunpack.c.l.b16 %v365
        %v406 = vunpack.c.h.b16 %v365
        %v407 = vunpack.c.l.b16 %v366
        %v408 = vunpack.c.h.b16 %v366
        %v409 = vunpack.c.l.b16 %v367
        %v410 = vunpack.c.h.b16 %v367
        %v411 = vunpack.c.l.b16 %v368
        %v412 = vunpack.c.h.b16 %v368
        %v413 = vpack.c.b16 %v401, %v397
        %v414 = vpack.c.b16 %v402, %v398
        %v415 = vpack.c.b16 %v403, %v399
        %v416 = vpack.c.b16 %v404, %v400
        %v417 = vpack.c.b16 %v409, %v405
        %v418 = vpack.c.b16 %v410, %v406
        %v419 = vpack.c.b16 %v411, %v407
        %v420 = vpack.c.b16 %v412, %v408
        %vm429 = vcmask 261120
        %v431 = vsel %vm429, %v385, 0
        %v434 = vsel %vm429, %v386, 0
        %v437 = vsel %vm429, %v387, 0
        %v440 = vsel %vm429, %v388, 0
        %442 = vmatpush.bf16.msra.mxu0 0
        %443 = vmatpush.bf16.msra.mxu0 0
        %444 = vmatpush.bf16.msra.mxu0 0
        %445 = vmatpush.bf16.msra.mxu0 0
        %446 = vmatpush.bf16.msra.mxu0 0
        %447 = vmatpush.bf16.msra.mxu0 0
        %448 = vmatpush.bf16.msra.mxu0 %v417
        %449 = vmatpush.bf16.msra.mxu0 %v413
        %450 = vmatmul.bf16.gmra.mxu0 %v431
        %v451 = vpop.f32.mrf.mxu0
        %v452 = vadd.f32 0.0, %v451
        %v453 = vpop.f32.mrf.mxu0
        %v454 = vadd.f32 0.0, %v453
        %455 = vmatmul.bf16.gmra.mxu0 %v434
        %v456 = vpop.f32.mrf.mxu0
        %v457 = vadd.f32 0.0, %v456
        %v458 = vpop.f32.mrf.mxu0
        %v459 = vadd.f32 0.0, %v458
        %460 = vmatmul.bf16.gmra.mxu0 %v437
        %v461 = vpop.f32.mrf.mxu0
        %v462 = vadd.f32 0.0, %v461
        %v463 = vpop.f32.mrf.mxu0
        %v464 = vadd.f32 0.0, %v463
        %465 = vmatmul.bf16.gmra.mxu0 %v440
        %v466 = vpop.f32.mrf.mxu0
        %v467 = vadd.f32 0.0, %v466
        %v468 = vpop.f32.mrf.mxu0
        %v469 = vadd.f32 0.0, %v468
        %470 = vdwg.mxu0
        %471 = vmatpush.bf16.msra.mxu0 0
        %472 = vmatpush.bf16.msra.mxu0 0
        %473 = vmatpush.bf16.msra.mxu0 0
        %474 = vmatpush.bf16.msra.mxu0 0
        %475 = vmatpush.bf16.msra.mxu0 0
        %476 = vmatpush.bf16.msra.mxu0 0
        %477 = vmatpush.bf16.msra.mxu0 %v418
        %478 = vmatpush.bf16.msra.mxu0 %v414
        %479 = vmatmul.bf16.gmra.mxu0 %v431
        %v480 = vpop.f32.mrf.mxu0
        %v481 = vadd.f32 0.0, %v480
        %v482 = vpop.f32.mrf.mxu0
        %v483 = vadd.f32 0.0, %v482
        %484 = vmatmul.bf16.gmra.mxu0 %v434
        %v485 = vpop.f32.mrf.mxu0
        %v486 = vadd.f32 0.0, %v485
        %v487 = vpop.f32.mrf.mxu0
        %v488 = vadd.f32 0.0, %v487
        %489 = vmatmul.bf16.gmra.mxu0 %v437
        %v490 = vpop.f32.mrf.mxu0
        %v491 = vadd.f32 0.0, %v490
        %v492 = vpop.f32.mrf.mxu0
        %v493 = vadd.f32 0.0, %v492
        %494 = vmatmul.bf16.gmra.mxu0 %v440
        %v495 = vpop.f32.mrf.mxu0
        %v496 = vadd.f32 0.0, %v495
        %v497 = vpop.f32.mrf.mxu0
        %v498 = vadd.f32 0.0, %v497
        %499 = vdwg.mxu0
        %500 = vmatpush.bf16.msra.mxu0 0
        %501 = vmatpush.bf16.msra.mxu0 0
        %502 = vmatpush.bf16.msra.mxu0 0
        %503 = vmatpush.bf16.msra.mxu0 0
        %504 = vmatpush.bf16.msra.mxu0 0
        %505 = vmatpush.bf16.msra.mxu0 0
        %506 = vmatpush.bf16.msra.mxu0 %v419
        %507 = vmatpush.bf16.msra.mxu0 %v415
        %508 = vmatmul.bf16.gmra.mxu0 %v431
        %v509 = vpop.f32.mrf.mxu0
        %v510 = vadd.f32 0.0, %v509
        %v511 = vpop.f32.mrf.mxu0
        %v512 = vadd.f32 0.0, %v511
        %513 = vmatmul.bf16.gmra.mxu0 %v434
        %v514 = vpop.f32.mrf.mxu0
        %v515 = vadd.f32 0.0, %v514
        %v516 = vpop.f32.mrf.mxu0
        %v517 = vadd.f32 0.0, %v516
        %518 = vmatmul.bf16.gmra.mxu0 %v437
        %v519 = vpop.f32.mrf.mxu0
        %v520 = vadd.f32 0.0, %v519
        %v521 = vpop.f32.mrf.mxu0
        %v522 = vadd.f32 0.0, %v521
        %523 = vmatmul.bf16.gmra.mxu0 %v440
        %v524 = vpop.f32.mrf.mxu0
        %v525 = vadd.f32 0.0, %v524
        %v526 = vpop.f32.mrf.mxu0
        %v527 = vadd.f32 0.0, %v526
        %528 = vdwg.mxu0
        %529 = vmatpush.bf16.msra.mxu0 0
        %530 = vmatpush.bf16.msra.mxu0 0
        %531 = vmatpush.bf16.msra.mxu0 0
        %532 = vmatpush.bf16.msra.mxu0 0
        %533 = vmatpush.bf16.msra.mxu0 0
        %534 = vmatpush.bf16.msra.mxu0 0
        %535 = vmatpush.bf16.msra.mxu0 %v420
        %536 = vmatpush.bf16.msra.mxu0 %v416
        %537 = vmatmul.bf16.gmra.mxu0 %v431
        %v538 = vpop.f32.mrf.mxu0
        %v539 = vadd.f32 0.0, %v538
        %v540 = vpop.f32.mrf.mxu0
        %v541 = vadd.f32 0.0, %v540
        %542 = vmatmul.bf16.gmra.mxu0 %v434
        %v543 = vpop.f32.mrf.mxu0
        %v544 = vadd.f32 0.0, %v543
        %v545 = vpop.f32.mrf.mxu0
        %v546 = vadd.f32 0.0, %v545
        %547 = vmatmul.bf16.gmra.mxu0 %v437
        %v548 = vpop.f32.mrf.mxu0
        %v549 = vadd.f32 0.0, %v548
        %v550 = vpop.f32.mrf.mxu0
        %v551 = vadd.f32 0.0, %v550
        %552 = vmatmul.bf16.gmra.mxu0 %v440
        %v553 = vpop.f32.mrf.mxu0
        %v554 = vadd.f32 0.0, %v553
        %v555 = vpop.f32.mrf.mxu0
        %v556 = vadd.f32 0.0, %v555
        %557 = vdwg.mxu0
        %v558 = vadd.f32 %v321, %v452
        %v559 = vadd.f32 %v322, %v481
        %v560 = vadd.f32 %v323, %v510
        %v561 = vadd.f32 %v324, %v539
        %v562 = vadd.f32 %v325, %v454
        %v563 = vadd.f32 %v326, %v483
        %v564 = vadd.f32 %v327, %v512
        %v565 = vadd.f32 %v328, %v541
        %v566 = vadd.f32 %v329, %v457
        %v567 = vadd.f32 %v330, %v486
        %v568 = vadd.f32 %v331, %v515
        %v569 = vadd.f32 %v332, %v544
        %v570 = vadd.f32 %v333, %v459
        %v571 = vadd.f32 %v334, %v488
        %v572 = vadd.f32 %v335, %v517
        %v573 = vadd.f32 %v336, %v546
        %v574 = vadd.f32 %v337, %v462
        %v575 = vadd.f32 %v338, %v491
        %v576 = vadd.f32 %v339, %v520
        %v577 = vadd.f32 %v340, %v549
        %v578 = vadd.f32 %v341, %v464
        %v579 = vadd.f32 %v342, %v493
        %v580 = vadd.f32 %v343, %v522
        %v581 = vadd.f32 %v344, %v551
        %v582 = vadd.f32 %v345, %v467
        %v583 = vadd.f32 %v346, %v496
        %v584 = vadd.f32 %v347, %v525
        %v585 = vadd.f32 %v348, %v554
        %v586 = vadd.f32 %v349, %v469
        %v587 = vadd.f32 %v350, %v498
        %v588 = vadd.f32 %v351, %v527
        %v589 = vadd.f32 %v352, %v556
        %590 = vst [vmem:[#allocation2] sm:$0xff] %v558
        %591 = vst [vmem:[#allocation2 + $0x8] sm:$0xff] %v559
        %592 = vst [vmem:[#allocation2 + $0x10] sm:$0xff] %v560
        %593 = vst [vmem:[#allocation2 + $0x18] sm:$0xff] %v561
        %594 = vst [vmem:[#allocation2 + $0x20] sm:$0xff] %v562
        %595 = vst [vmem:[#allocation2 + $0x28] sm:$0xff] %v563
        %596 = vst [vmem:[#allocation2 + $0x30] sm:$0xff] %v564
        %597 = vst [vmem:[#allocation2 + $0x38] sm:$0xff] %v565
        %598 = vst [vmem:[#allocation2 + $0x40] sm:$0xff] %v566
        %599 = vst [vmem:[#allocation2 + $0x48] sm:$0xff] %v567
        %600 = vst [vmem:[#allocation2 + $0x50] sm:$0xff] %v568
        %601 = vst [vmem:[#allocation2 + $0x58] sm:$0xff] %v569
        %602 = vst [vmem:[#allocation2 + $0x60] sm:$0xff] %v570
        %603 = vst [vmem:[#allocation2 + $0x68] sm:$0xff] %v571
        %604 = vst [vmem:[#allocation2 + $0x70] sm:$0xff] %v572
        %605 = vst [vmem:[#allocation2 + $0x78] sm:$0xff] %v573
        %606 = vst [vmem:[#allocation2 + $0x80] sm:$0xff] %v574
        %607 = vst [vmem:[#allocation2 + $0x88] sm:$0xff] %v575
        %608 = vst [vmem:[#allocation2 + $0x90] sm:$0xff] %v576
        %609 = vst [vmem:[#allocation2 + $0x98] sm:$0xff] %v577
        %610 = vst [vmem:[#allocation2 + $0xa0] sm:$0xff] %v578
        %611 = vst [vmem:[#allocation2 + $0xa8] sm:$0xff] %v579
        %612 = vst [vmem:[#allocation2 + $0xb0] sm:$0xff] %v580
        %613 = vst [vmem:[#allocation2 + $0xb8] sm:$0xff] %v581
        %614 = vst [vmem:[#allocation2 + $0xc0] sm:$0xff] %v582
        %615 = vst [vmem:[#allocation2 + $0xc8] sm:$0xff] %v583
        %616 = vst [vmem:[#allocation2 + $0xd0] sm:$0xff] %v584
        %617 = vst [vmem:[#allocation2 + $0xd8] sm:$0xff] %v585
        %618 = vst [vmem:[#allocation2 + $0xe0] sm:$0xff] %v586
        %619 = vst [vmem:[#allocation2 + $0xe8] sm:$0xff] %v587
        %620 = vst [vmem:[#allocation2 + $0xf0] sm:$0xff] %v588
        %621 = vst [vmem:[#allocation2 + $0xf8] sm:$0xff] %v589
        // Predicated region
        $region60: #{rebnconv.1} parent=50 // pred_check
          %p622 = pneg %p285
        $region61: #{rebnconv.1} parent=50 // pred_check_branch
          %624 = sbr.rel (%p622) target = $region63
        $region62: #{rebnconv.1} parent=50 // pred_region
          %v625 = vld [vmem:[#allocation2] sm:$0xff]
          %v626 = vld [vmem:[#allocation2 + $0x8] sm:$0xff]
          %v627 = vld [vmem:[#allocation2 + $0x10] sm:$0xff]
          %v628 = vld [vmem:[#allocation2 + $0x18] sm:$0xff]
          %v629 = vld [vmem:[#allocation2 + $0x20] sm:$0xff]
          %v630 = vld [vmem:[#allocation2 + $0x28] sm:$0xff]
          %v631 = vld [vmem:[#allocation2 + $0x30] sm:$0xff]
          %v632 = vld [vmem:[#allocation2 + $0x38] sm:$0xff]
          %v633 = vld [vmem:[#allocation2 + $0x40] sm:$0xff]
          %v634 = vld [vmem:[#allocation2 + $0x48] sm:$0xff]
          %v635 = vld [vmem:[#allocation2 + $0x50] sm:$0xff]
          %v636 = vld [vmem:[#allocation2 + $0x58] sm:$0xff]
          %v637 = vld [vmem:[#allocation2 + $0x60] sm:$0xff]
          %v638 = vld [vmem:[#allocation2 + $0x68] sm:$0xff]
          %v639 = vld [vmem:[#allocation2 + $0x70] sm:$0xff]
          %v640 = vld [vmem:[#allocation2 + $0x78] sm:$0xff]
          %v641 = vld [vmem:[#allocation2 + $0x80] sm:$0xff]
          %v642 = vld [vmem:[#allocation2 + $0x88] sm:$0xff]
          %v643 = vld [vmem:[#allocation2 + $0x90] sm:$0xff]
          %v644 = vld [vmem:[#allocation2 + $0x98] sm:$0xff]
          %v645 = vld [vmem:[#allocation2 + $0xa0] sm:$0xff]
          %v646 = vld [vmem:[#allocation2 + $0xa8] sm:$0xff]
          %v647 = vld [vmem:[#allocation2 + $0xb0] sm:$0xff]
          %v648 = vld [vmem:[#allocation2 + $0xb8] sm:$0xff]
          %v649 = vld [vmem:[#allocation2 + $0xc0] sm:$0xff]
          %v650 = vld [vmem:[#allocation2 + $0xc8] sm:$0xff]
          %v651 = vld [vmem:[#allocation2 + $0xd0] sm:$0xff]
          %v652 = vld [vmem:[#allocation2 + $0xd8] sm:$0xff]
          %v653 = vld [vmem:[#allocation2 + $0xe0] sm:$0xff]
          %v654 = vld [vmem:[#allocation2 + $0xe8] sm:$0xff]
          %v655 = vld [vmem:[#allocation2 + $0xf0] sm:$0xff]
          %v656 = vld [vmem:[#allocation2 + $0xf8] sm:$0xff]
          %v657 = vld [vmem:[%s280] sm:$0xff]
          %v658 = vld [vmem:[%s280 + $0x8] sm:$0xff]
          %v659 = vld [vmem:[%s280 + $0x10] sm:$0xff]
          %v660 = vld [vmem:[%s280 + $0x18] sm:$0xff]
          %v661 = vld [vmem:[%s280 + $0x20] sm:$0xff]
          %v662 = vld [vmem:[%s280 + $0x28] sm:$0xff]
          %v663 = vld [vmem:[%s280 + $0x30] sm:$0xff]
          %v664 = vld [vmem:[%s280 + $0x38] sm:$0xff]
          %666 = vset.pattern.permute.xlu0 0
          %667 = vperm.xlu0 %666, %v657
          %v668 = vpop.permute.xlu0 %667
          %671 = vset.pattern.permute.xlu0 0
          %672 = vperm.xlu0 %671, %v658
          %v673 = vpop.permute.xlu0 %672
          %676 = vset.pattern.permute.xlu0 0
          %677 = vperm.xlu0 %676, %v659
          %v678 = vpop.permute.xlu0 %677
          %681 = vset.pattern.permute.xlu0 0
          %682 = vperm.xlu0 %681, %v660
          %v683 = vpop.permute.xlu0 %682
          %686 = vset.pattern.permute.xlu0 0
          %687 = vperm.xlu0 %686, %v661
          %v688 = vpop.permute.xlu0 %687
          %691 = vset.pattern.permute.xlu0 0
          %692 = vperm.xlu0 %691, %v662
          %v693 = vpop.permute.xlu0 %692
          %696 = vset.pattern.permute.xlu0 0
          %697 = vperm.xlu0 %696, %v663
          %v698 = vpop.permute.xlu0 %697
          %701 = vset.pattern.permute.xlu0 0
          %702 = vperm.xlu0 %701, %v664
          %v703 = vpop.permute.xlu0 %702
          %v705 = vadd.f32 %v625, %v668
          %v706 = vadd.f32 %v626, %v668
          %v707 = vadd.f32 %v627, %v668
          %v708 = vadd.f32 %v628, %v668
          %v709 = vadd.f32 %v629, %v673
          %v710 = vadd.f32 %v630, %v673
          %v711 = vadd.f32 %v631, %v673
          %v712 = vadd.f32 %v632, %v673
          %v713 = vadd.f32 %v633, %v678
          %v714 = vadd.f32 %v634, %v678
          %v715 = vadd.f32 %v635, %v678
          %v716 = vadd.f32 %v636, %v678
          %v717 = vadd.f32 %v637, %v683
          %v718 = vadd.f32 %v638, %v683
          %v719 = vadd.f32 %v639, %v683
          %v720 = vadd.f32 %v640, %v683
          %v721 = vadd.f32 %v641, %v688
          %v722 = vadd.f32 %v642, %v688
          %v723 = vadd.f32 %v643, %v688
          %v724 = vadd.f32 %v644, %v688
          %v725 = vadd.f32 %v645, %v693
          %v726 = vadd.f32 %v646, %v693
          %v727 = vadd.f32 %v647, %v693
          %v728 = vadd.f32 %v648, %v693
          %v729 = vadd.f32 %v649, %v698
          %v730 = vadd.f32 %v650, %v698
          %v731 = vadd.f32 %v651, %v698
          %v732 = vadd.f32 %v652, %v698
          %v733 = vadd.f32 %v653, %v703
          %v734 = vadd.f32 %v654, %v703
          %v735 = vadd.f32 %v655, %v703
          %v736 = vadd.f32 %v656, %v703
          %v737 = vmax.f32 %v705, 0.0
          %v738 = vmax.f32 %v706, 0.0
          %v739 = vmax.f32 %v707, 0.0
          %v740 = vmax.f32 %v708, 0.0
          %v741 = vmax.f32 %v709, 0.0
          %v742 = vmax.f32 %v710, 0.0
          %v743 = vmax.f32 %v711, 0.0
          %v744 = vmax.f32 %v712, 0.0
          %v745 = vmax.f32 %v713, 0.0
          %v746 = vmax.f32 %v714, 0.0
          %v747 = vmax.f32 %v715, 0.0
          %v748 = vmax.f32 %v716, 0.0
          %v749 = vmax.f32 %v717, 0.0
          %v750 = vmax.f32 %v718, 0.0
          %v751 = vmax.f32 %v719, 0.0
          %v752 = vmax.f32 %v720, 0.0
          %v753 = vmax.f32 %v721, 0.0
          %v754 = vmax.f32 %v722, 0.0
          %v755 = vmax.f32 %v723, 0.0
          %v756 = vmax.f32 %v724, 0.0
          %v757 = vmax.f32 %v725, 0.0
          %v758 = vmax.f32 %v726, 0.0
          %v759 = vmax.f32 %v727, 0.0
          %v760 = vmax.f32 %v728, 0.0
          %v761 = vmax.f32 %v729, 0.0
          %v762 = vmax.f32 %v730, 0.0
          %v763 = vmax.f32 %v731, 0.0
          %v764 = vmax.f32 %v732, 0.0
          %v765 = vmax.f32 %v733, 0.0
          %v766 = vmax.f32 %v734, 0.0
          %v767 = vmax.f32 %v735, 0.0
          %v768 = vmax.f32 %v736, 0.0
          %769 = vst [vmem:[%s264] sm:$0xff] %v737
          %770 = vst [vmem:[%s264 + $0x8] sm:$0xff] %v738
          %771 = vst [vmem:[%s264 + $0x10] sm:$0xff] %v739
          %772 = vst [vmem:[%s264 + $0x18] sm:$0xff] %v740
          %773 = vst [vmem:[%s264 + $0x20] sm:$0xff] %v741
          %774 = vst [vmem:[%s264 + $0x28] sm:$0xff] %v742
          %775 = vst [vmem:[%s264 + $0x30] sm:$0xff] %v743
          %776 = vst [vmem:[%s264 + $0x38] sm:$0xff] %v744
          %777 = vst [vmem:[%s264 + $0x40] sm:$0xff] %v745
          %778 = vst [vmem:[%s264 + $0x48] sm:$0xff] %v746
          %779 = vst [vmem:[%s264 + $0x50] sm:$0xff] %v747
          %780 = vst [vmem:[%s264 + $0x58] sm:$0xff] %v748
          %781 = vst [vmem:[%s264 + $0x60] sm:$0xff] %v749
          %782 = vst [vmem:[%s264 + $0x68] sm:$0xff] %v750
          %783 = vst [vmem:[%s264 + $0x70] sm:$0xff] %v751
          %784 = vst [vmem:[%s264 + $0x78] sm:$0xff] %v752
          %785 = vst [vmem:[%s264 + $0x80] sm:$0xff] %v753
          %786 = vst [vmem:[%s264 + $0x88] sm:$0xff] %v754
          %787 = vst [vmem:[%s264 + $0x90] sm:$0xff] %v755
          %788 = vst [vmem:[%s264 + $0x98] sm:$0xff] %v756
          %789 = vst [vmem:[%s264 + $0xa0] sm:$0xff] %v757
          %790 = vst [vmem:[%s264 + $0xa8] sm:$0xff] %v758
          %791 = vst [vmem:[%s264 + $0xb0] sm:$0xff] %v759
          %792 = vst [vmem:[%s264 + $0xb8] sm:$0xff] %v760
          %793 = vst [vmem:[%s264 + $0xc0] sm:$0xff] %v761
          %794 = vst [vmem:[%s264 + $0xc8] sm:$0xff] %v762
          %795 = vst [vmem:[%s264 + $0xd0] sm:$0xff] %v763
          %796 = vst [vmem:[%s264 + $0xd8] sm:$0xff] %v764
          %797 = vst [vmem:[%s264 + $0xe0] sm:$0xff] %v765
          %798 = vst [vmem:[%s264 + $0xe8] sm:$0xff] %v766
          %799 = vst [vmem:[%s264 + $0xf0] sm:$0xff] %v767
          %800 = vst [vmem:[%s264 + $0xf8] sm:$0xff] %v768
        $region63: #{rebnconv.1} parent=50 // pred_fallthru
          _
        %s801 = sand.u32 %s125, 1
        %s802 = sand.u32 %s125, 1
        %s803 = smul.addr %s802, 256
        %s804 = scalar_lea.vmem [#allocation4], %s803
        // Predicated region
        $region64: #{rebnconv.1} parent=50 // pred_check
          %p805 = pneg %p135
        $region65: #{rebnconv.1} parent=50 // pred_check_branch
          %807 = sbr.rel (%p805) target = $region67
        $region66: #{rebnconv.1} parent=50 // pred_region
          %s808 = smul.u32 8, %s19
          %s809 = smul.u32 4, %s20
          %s810 = smul.addr %s808, 8
          %s811 = sadd.s32 %s809, %s810
          %s812 = smul.addr %s811, 8
          %s813 = scalar_lea.vmem %s3, %s812
          // Predicated region
          $region68: #{rebnconv.1} parent=66 // pred_check
            _
          $region69: #{rebnconv.1} parent=66 // pred_check_branch
            %815 = sbr.rel (0) target = $region71
          $region70: #{rebnconv.1} parent=66 // pred_region
            // Predicated region
            $region72: #{rebnconv.1} parent=70 // pred_check
              _
            $region73: #{rebnconv.1} parent=70 // pred_check_branch
              %817 = sbr.rel (0) target = $region75
            $region74: #{rebnconv.1} parent=70 // pred_region
              loop: start=0, step=1, limit=1
              $region76: #{rebnconv.1} parent=74 // loop_pre_header
                _
              $region77: #{rebnconv.1} parent=74 // loop_header
                %s819 = sphi 0, %s823
                %p820 = scmp.ge.s32.totalorder %s819, 1
                %s824 = sphi %s804, %s804
                %s825 = sphi %s813, %s813
              $region78: #{rebnconv.1} parent=74 // loop_header_branch
                %822 = sbr.rel (%p820) target = $region82
              $region79: #{rebnconv.1} parent=74 // loop_body
                %v826 = vld [vmem:[%s824] sm:$0xff]
                %827 = vst [vmem:[%s825] sm:$0xff] %v826
                %v828 = vld [vmem:[%s824 + $0x8] sm:$0xff]
                %829 = vst [vmem:[%s825 + $0x8] sm:$0xff] %v828
                %v830 = vld [vmem:[%s824 + $0x10] sm:$0xff]
                %831 = vst [vmem:[%s825 + $0x10] sm:$0xff] %v830
                %v832 = vld [vmem:[%s824 + $0x18] sm:$0xff]
                %833 = vst [vmem:[%s825 + $0x18] sm:$0xff] %v832
                %v834 = vld [vmem:[%s824 + $0x20] sm:$0xff]
                %835 = vst [vmem:[%s825 + $0x40] sm:$0xff] %v834
                %v836 = vld [vmem:[%s824 + $0x28] sm:$0xff]
                %837 = vst [vmem:[%s825 + $0x48] sm:$0xff] %v836
                %v838 = vld [vmem:[%s824 + $0x30] sm:$0xff]
                %839 = vst [vmem:[%s825 + $0x50] sm:$0xff] %v838
                %v840 = vld [vmem:[%s824 + $0x38] sm:$0xff]
                %841 = vst [vmem:[%s825 + $0x58] sm:$0xff] %v840
                %v842 = vld [vmem:[%s824 + $0x40] sm:$0xff]
                %843 = vst [vmem:[%s825 + $0x80] sm:$0xff] %v842
                %v844 = vld [vmem:[%s824 + $0x48] sm:$0xff]
                %845 = vst [vmem:[%s825 + $0x88] sm:$0xff] %v844
                %v846 = vld [vmem:[%s824 + $0x50] sm:$0xff]
                %847 = vst [vmem:[%s825 + $0x90] sm:$0xff] %v846
                %v848 = vld [vmem:[%s824 + $0x58] sm:$0xff]
                %849 = vst [vmem:[%s825 + $0x98] sm:$0xff] %v848
                %v850 = vld [vmem:[%s824 + $0x60] sm:$0xff]
                %851 = vst [vmem:[%s825 + $0xc0] sm:$0xff] %v850
                %v852 = vld [vmem:[%s824 + $0x68] sm:$0xff]
                %853 = vst [vmem:[%s825 + $0xc8] sm:$0xff] %v852
                %v854 = vld [vmem:[%s824 + $0x70] sm:$0xff]
                %855 = vst [vmem:[%s825 + $0xd0] sm:$0xff] %v854
                %v856 = vld [vmem:[%s824 + $0x78] sm:$0xff]
                %857 = vst [vmem:[%s825 + $0xd8] sm:$0xff] %v856
                %v858 = vld [vmem:[%s824 + $0x80] sm:$0xff]
                %859 = vst [vmem:[%s825 + $0x100] sm:$0xff] %v858
                %v860 = vld [vmem:[%s824 + $0x88] sm:$0xff]
                %861 = vst [vmem:[%s825 + $0x108] sm:$0xff] %v860
                %v862 = vld [vmem:[%s824 + $0x90] sm:$0xff]
                %863 = vst [vmem:[%s825 + $0x110] sm:$0xff] %v862
                %v864 = vld [vmem:[%s824 + $0x98] sm:$0xff]
                %865 = vst [vmem:[%s825 + $0x118] sm:$0xff] %v864
                %v866 = vld [vmem:[%s824 + $0xa0] sm:$0xff]
                %867 = vst [vmem:[%s825 + $0x140] sm:$0xff] %v866
                %v868 = vld [vmem:[%s824 + $0xa8] sm:$0xff]
                %869 = vst [vmem:[%s825 + $0x148] sm:$0xff] %v868
                %v870 = vld [vmem:[%s824 + $0xb0] sm:$0xff]
                %871 = vst [vmem:[%s825 + $0x150] sm:$0xff] %v870
                %v872 = vld [vmem:[%s824 + $0xb8] sm:$0xff]
                %873 = vst [vmem:[%s825 + $0x158] sm:$0xff] %v872
                %v874 = vld [vmem:[%s824 + $0xc0] sm:$0xff]
                %875 = vst [vmem:[%s825 + $0x180] sm:$0xff] %v874
                %v876 = vld [vmem:[%s824 + $0xc8] sm:$0xff]
                %877 = vst [vmem:[%s825 + $0x188] sm:$0xff] %v876
                %v878 = vld [vmem:[%s824 + $0xd0] sm:$0xff]
                %879 = vst [vmem:[%s825 + $0x190] sm:$0xff] %v878
                %v880 = vld [vmem:[%s824 + $0xd8] sm:$0xff]
                %881 = vst [vmem:[%s825 + $0x198] sm:$0xff] %v880
                %v882 = vld [vmem:[%s824 + $0xe0] sm:$0xff]
                %883 = vst [vmem:[%s825 + $0x1c0] sm:$0xff] %v882
                %v884 = vld [vmem:[%s824 + $0xe8] sm:$0xff]
                %885 = vst [vmem:[%s825 + $0x1c8] sm:$0xff] %v884
                %v886 = vld [vmem:[%s824 + $0xf0] sm:$0xff]
                %887 = vst [vmem:[%s825 + $0x1d0] sm:$0xff] %v886
                %v888 = vld [vmem:[%s824 + $0xf8] sm:$0xff]
                %889 = vst [vmem:[%s825 + $0x1d8] sm:$0xff] %v888
              $region80: #{rebnconv.1} parent=74 // loop_footer
                %s823 = sadd.s32 1, %s819
              $region81: #{rebnconv.1} parent=74 // loop_footer_branch
                %818 = sbr.rel target = $region77
              $region82: #{rebnconv.1} parent=74 // loop_exit
                _
            $region75: #{rebnconv.1} parent=70 // pred_fallthru
              _
            // Predicated region
            $region83: #{rebnconv.1} parent=70 // pred_check
              _
            $region84: #{rebnconv.1} parent=70 // pred_check_branch
              %891 = sbr.rel target = $region86
            $region85: #{rebnconv.1} parent=70 // pred_region
              _
            $region86: #{rebnconv.1} parent=70 // pred_fallthru
              _
          $region71: #{rebnconv.1} parent=66 // pred_fallthru
            _
          %892 = vnop
        $region67: #{rebnconv.1} parent=50 // pred_fallthru
          _
      $region51: #{rebnconv.1} parent=5 // pred_fallthru
        _
      %p893 = scmp.le.s32.totalorder 2, %s9
      // Predicated region
      $region87: #{rebnconv.1} parent=5 // pred_check
        %p894 = pneg %p893
      $region88: #{rebnconv.1} parent=5 // pred_check_branch
        %896 = sbr.rel (%p894) target = $region90
      $region89: #{rebnconv.1} parent=5 // pred_region
        %s897 = ssub.s32 %s9, 2
        // Predicated region
        $region91: #{rebnconv.1} parent=89 // pred_check
          %p898 = pneg %p141
        $region92: #{rebnconv.1} parent=89 // pred_check_branch
          %900 = sbr.rel (%p898) target = $region94
        $region93: #{rebnconv.1} parent=89 // pred_region
          %s901 = sand.u32 %s126, 1
          %s902 = sand.u32 %s126, 1
          %s903 = smul.addr %s902, 256
          %s904 = scalar_lea.vmem [#allocation4], %s903
        $region94: #{rebnconv.1} parent=89 // pred_fallthru
          _
      $region90: #{rebnconv.1} parent=5 // pred_fallthru
        _
    $region6: #{rebnconv.1} parent=1 // loop_footer
      %s13 = sadd.s32 1, %s9
    $region7: #{rebnconv.1} parent=1 // loop_footer_branch
      %8 = sbr.rel target = $region3
    $region8: #{rebnconv.1} parent=1 // loop_exit
      _

</llo_original>
